<compile_context>
chip_gen: v5e
topology: v5e:2x2
jax: 0.10.0
libtpu: 0.0.40
codegen_flags: <defaults>
</compile_context>

<pallas_src>
import functools

import jax
import jax.numpy as jnp
from jax import lax
from jax.experimental import pallas as pl
from jax.experimental.pallas import tpu as pltpu


def _round_up(x, m):
    return (x + m - 1) // m * m


def _sublane(dtype):
    itemsize = jnp.dtype(dtype).itemsize
    if itemsize >= 4:
        return 8
    if itemsize == 2:
        return 16
    return 32


def _pick_tm(M, dtype):
    sub = _sublane(dtype)
    tm = min(512, _round_up(M, sub))
    tm = _round_up(tm, sub)
    # v7x megacore: a 1-step grid leaves one TensorCore idle -> prefer >= 2 row tiles
    # whenever there is enough work (tm stays a multiple of 256 for full MXU passes).
    if tm > 256 and M > 256 and _round_up(M, tm) // tm < 2:
        tm = 256
    return tm


def _pick_hidden_chunk(H_p, max_th=1024):
    """Largest multiple-of-128 divisor of H_p that is <= max_th (bounds the live fc1 slab)."""
    max_th = max(128, min(max_th, H_p))
    start = max_th - (max_th % 128)
    for th in range(start, 127, -128):
        if H_p % th == 0:
            return th
    return 128


def _vmem_capacity_bytes():
    try:
        cap = getattr(pltpu.get_tpu_info(), "vmem_capacity_bytes", None)
        if cap:
            return int(cap)
    except Exception:
        pass
    return 64 << 20  # conservative fallback (v7x per-core VMEM)


def _mlp_kernel(x_ref, w1_ref, b1_ref, w2_ref, b2_ref, o_ref, acc_ref, *, th, n_h, ew_dtype):
    # x_ref : (tm, C_p)     w1_ref: (C_p, H_p)    b1_ref: (1, H_p) f32
    # w2_ref: (H_p, O_p)    b2_ref: (1, O_p) f32  o_ref : (tm, O_p)
    # acc_ref: (tm, O_p) f32 scratch (fc2 accumulator when the hidden dim is chunked)
    x = x_ref[...]
    w_dtype = w2_ref.dtype

    def fc1_gelu(off):
        # fc1 chunk: native-dtype MXU operands, f32 accumulation.
        h = jnp.dot(x, w1_ref[:, pl.ds(off, th)], preferred_element_type=jnp.float32)
        h = h + b1_ref[:, pl.ds(off, th)]
        # tanh-approx GELU -> EUP slot (idle otherwise).  Slight drift vs torch's erf GELU.
        # bf16 elementwise when operands are bf16 (halves VALU/EUP cost on v6e/v7x).
        h = jax.nn.gelu(h.astype(ew_dtype), approximate=True)
        return h.astype(w_dtype)

    if n_h == 1:
        y = jnp.dot(fc1_gelu(0), w2_ref[...], preferred_element_type=jnp.float32)
        o_ref[...] = (y + b2_ref[...]).astype(o_ref.dtype)
    else:
        acc_ref[...] = jnp.zeros_like(acc_ref)

        def body(kc, carry):
            off = pl.multiple_of(kc * th, 128)
            acc_ref[...] += jnp.dot(fc1_gelu(off), w2_ref[pl.ds(off, th), :],
                                    preferred_element_type=jnp.float32)
            return carry

        lax.fori_loop(0, n_h, body, 0, unroll=n_h <= 8)
        o_ref[...] = (acc_ref[...] + b2_ref[...]).astype(o_ref.dtype)
    # Dropout with p=0.0 is the identity (inference semantics of the reference module).


def prepare_mlp_params(w1_t, b1, w2_t, b2):
    """Pad PyTorch-Linear weights (transposed to (in, out)) to lane-aligned shapes and
    pre-cast biases to f32.  Call ONCE at init and reuse: re-padding weights on every
    forward call wastes HBM bandwidth."""
    C, H = w1_t.shape
    H2, O = w2_t.shape
    assert H == H2, "fc1/fc2 hidden dims must match"
    C_p, H_p, O_p = _round_up(C, 128), _round_up(H, 128), _round_up(O, 128)
    w1p = w1_t if (C_p == C and H_p == H) else jnp.pad(w1_t, ((0, C_p - C), (0, H_p - H)))
    w2p = w2_t if (H_p == H and O_p == O) else jnp.pad(w2_t, ((0, H_p - H), (0, O_p - O)))
    b1p = jnp.pad(b1.astype(jnp.float32), (0, H_p - H)).reshape(1, H_p)
    b2p = jnp.pad(b2.astype(jnp.float32), (0, O_p - O)).reshape(1, O_p)
    return w1p, b1p, w2p, b2p


@functools.partial(jax.jit, static_argnames=("out_features", "tm", "th"))
def mlp_pallas(x, w1p, b1p, w2p, b2p, *, out_features=None, tm=None, th=None):
    """x: (B, N, C); (w1p, b1p, w2p, b2p) from prepare_mlp_params.  Returns (B, N, out)."""
    B, N, C = x.shape
    C_p, H_p = w1p.shape
    O_p = w2p.shape[1]
    O = out_features if out_features is not None else O_p
    M = B * N

    x_bytes = jnp.dtype(x.dtype).itemsize
    w_bytes = jnp.dtype(w1p.dtype).itemsize
    ew_dtype = jnp.bfloat16 if x.dtype == jnp.bfloat16 else jnp.float32
    # TODO(synk): force ew_dtype=f32 on v5e (no bf16 VALU/EUP) if pack/unpack overhead shows up.
    ew_bytes = jnp.dtype(ew_dtype).itemsize

    if tm is None:
        tm = _pick_tm(M, x.dtype)
    if th is None:
        th = _pick_hidden_chunk(H_p)

    def vmem_need(tm_, th_):
        return (
            2 * tm_ * C_p * x_bytes                  # double-buffered x tiles
            + 2 * tm_ * O_p * x_bytes                # double-buffered out tiles
            + (C_p * H_p + H_p * O_p) * w_bytes      # resident, single-buffered weights
            + (H_p + O_p) * 4                        # f32 biases
            + tm_ * th_ * (4 + ew_bytes + w_bytes)   # fc1 acc chunk + GELU copy + MXU operand
            + tm_ * O_p * 4                          # f32 fc2 accumulator scratch
        )

    cap = int(0.85 * _vmem_capacity_bytes())         # ~109 MiB v5e/v6e, ~54 MiB v7x
    while vmem_need(tm, th) > cap and th > 128:      # shrink the hidden chunk before failing
        th = _pick_hidden_chunk(H_p, max_th=th - 128)
    # TODO(synk): block the weights over C/O grid axes as a fallback for layers whose
    # resident weights alone exceed the per-core VMEM budget.
    vmem_limit = min(max(int(1.25 * vmem_need(tm, th)) + (2 << 20), 32 << 20), cap)
    n_h = H_p // th

    M_p = _round_up(M, tm)
    x2 = x.reshape(M, C)
    if (M_p != M) or (C_p != C):
        # Zero padding is exact: zero rows/feature columns contribute nothing
        # (GELU(0)=0, zero weight rows/cols) and padded rows are sliced off below.
        x2 = jnp.pad(x2, ((0, M_p - M), (0, C_p - C)))

    cost = pl.CostEstimate(
        flops=2 * M_p * (C_p * H_p + H_p * O_p),
        transcendentals=M_p * H_p,
        bytes_accessed=(M_p * (C_p + O_p)) * x_bytes
        + (C_p * H_p + H_p * O_p) * w_bytes
        + (H_p + O_p) * 4,
    )

    resident = dict(pipeline_mode=pl.Buffered(1))    # constant across the grid: single buffer

    out2 = pl.pallas_call(
        functools.partial(_mlp_kernel, th=th, n_h=n_h, ew_dtype=ew_dtype),
        out_shape=jax.ShapeDtypeStruct((M_p, O_p), x.dtype),
        grid_spec=pltpu.PrefetchScalarGridSpec(
            num_scalar_prefetch=0,
            grid=(M_p // tm,),
            in_specs=[
                pl.BlockSpec((tm, C_p), lambda i: (i, 0)),               # x tile (pipelined)
                pl.BlockSpec((C_p, H_p), lambda i: (0, 0), **resident),  # W1^T (resident)
                pl.BlockSpec((1, H_p), lambda i: (0, 0), **resident),    # b1 (f32)
                pl.BlockSpec((H_p, O_p), lambda i: (0, 0), **resident),  # W2^T (resident)
                pl.BlockSpec((1, O_p), lambda i: (0, 0), **resident),    # b2 (f32)
            ],
            out_specs=pl.BlockSpec((tm, O_p), lambda i: (i, 0)),
            scratch_shapes=[pltpu.VMEM((tm, O_p), jnp.float32)],
        ),
        compiler_params=pltpu.CompilerParams(
            dimension_semantics=("parallel",),
            vmem_limit_bytes=vmem_limit,
        ),
        cost_estimate=cost,
    )(x2, w1p, b1p, w2p, b2p)

    if (M_p != M) or (O_p != O):
        out2 = out2[:M, :O]
    return out2.reshape(B, N, O)


def _reference(x, w1_t, b1, w2_t, b2):
    # torch.nn.GELU default is the exact erf form; the kernel uses the tanh approximation.
    h = jnp.einsum("bnc,ch->bnh", x.astype(jnp.float32), w1_t.astype(jnp.float32))
    h = h + b1.astype(jnp.float32)
    h = jax.nn.gelu(h, approximate=False)
    y = jnp.einsum("bnh,ho->bno", h, w2_t.astype(jnp.float32)) + b2.astype(jnp.float32)
    return y


if __name__ == "__main__":
    key = jax.random.PRNGKey(0)
    k_x, k_w1, k_b1, k_w2, k_b2 = jax.random.split(key, 5)

    # Small shapes consistent with the module: (B, N, C) token sequence.
    B, N = 2, 8
    in_features, hid_features, out_features = 32, 64, 32

    x = jax.random.normal(k_x, (B, N, in_features), dtype=jnp.float32)
    # PyTorch Linear weight is (out, in); we store the transposed (in, out) form.
    w1_t = jax.random.normal(k_w1, (in_features, hid_features), dtype=jnp.float32) * 0.05
    b1 = jax.random.normal(k_b1, (hid_features,), dtype=jnp.float32) * 0.05
    w2_t = jax.random.normal(k_w2, (hid_features, out_features), dtype=jnp.float32) * 0.05
    b2 = jax.random.normal(k_b2, (out_features,), dtype=jnp.float32) * 0.05

    ref = _reference(x, w1_t, b1, w2_t, b2)

    # f32 path: pad weights once (prepare), reuse across calls.
    params = prepare_mlp_params(w1_t, b1, w2_t, b2)
    out = jax.block_until_ready(mlp_pallas(x, *params, out_features=out_features))
    assert out.shape == (B, N, out_features)
    # tanh-approx GELU vs torch's erf default: drift is <~1e-3 at these scales.
    assert jnp.allclose(out, ref, atol=1e-2, rtol=1e-2), "f32 mismatch vs reference"

    # bf16 path: bf16 operands go to the MXU natively, bf16 elementwise, f32 accumulation.
    params_bf16 = prepare_mlp_params(
        w1_t.astype(jnp.bfloat16), b1.astype(jnp.bfloat16),
        w2_t.astype(jnp.bfloat16), b2.astype(jnp.bfloat16))
    out_bf16 = jax.block_until_ready(
        mlp_pallas(x.astype(jnp.bfloat16), *params_bf16, out_features=out_features))
    assert out_bf16.shape == (B, N, out_features)
    assert jnp.allclose(out_bf16.astype(jnp.float32), ref, atol=6e-2, rtol=6e-2), \
        "bf16 mismatch vs reference"

    print("KERNEL_OK")
</pallas_src>

<mosaic_0001>
module attributes {stable_mosaic.version = 11 : i64} {
  func.func @_mlp_kernel(%arg0: i32, %arg1: memref<16x128xf32, #tpu.memory_space<vmem>>, %arg2: memref<128x128xf32, #tpu.memory_space<vmem>>, %arg3: memref<1x128xf32, #tpu.memory_space<vmem>>, %arg4: memref<128x128xf32, #tpu.memory_space<vmem>>, %arg5: memref<1x128xf32, #tpu.memory_space<vmem>>, %arg6: memref<16x128xf32, #tpu.memory_space<vmem>>, %arg7: memref<16x128xf32, #tpu.memory_space<vmem>>) attributes {dimension_semantics = [#tpu.dimension_semantics<parallel>], iteration_bounds = array<i64: 1>, scalar_prefetch = 0 : i64, scratch_operands = 1 : i64, tpu.core_type = #tpu.core_type<tc>, window_params = [{transform_indices = @transform_0, window_bounds = array<i64: 16, 128>}, {pipeline_mode = #tpu.pipeline_mode<synchronous>, transform_indices = @transform_1, window_bounds = array<i64: 128, 128>}, {pipeline_mode = #tpu.pipeline_mode<synchronous>, transform_indices = @transform_2, window_bounds = array<i64: 1, 128>}, {pipeline_mode = #tpu.pipeline_mode<synchronous>, transform_indices = @transform_3, window_bounds = array<i64: 128, 128>}, {pipeline_mode = #tpu.pipeline_mode<synchronous>, transform_indices = @transform_4, window_bounds = array<i64: 1, 128>}, {transform_indices = @transform_5, window_bounds = array<i64: 16, 128>}]} {
    %c0 = arith.constant 0 : index
    %c0_0 = arith.constant 0 : index
    %0 = vector.load %arg1[%c0, %c0_0] : memref<16x128xf32, #tpu.memory_space<vmem>>, vector<16x128xf32>
    %c0_1 = arith.constant 0 : index
    %c0_2 = arith.constant 0 : index
    %1 = vector.load %arg2[%c0_1, %c0_2] : memref<128x128xf32, #tpu.memory_space<vmem>>, vector<128x128xf32>
    %cst = arith.constant dense<0.000000e+00> : vector<16x128xf32>
    %2 = tpu.matmul %0, %1, %cst {dimension_numbers = #tpu.dot_dimension_numbers<[1], [0], [0], [1], [0, 0, 1, 1], [], []>} : vector<16x128xf32>, vector<128x128xf32>, vector<16x128xf32> -> vector<16x128xf32>
    %c0_3 = arith.constant 0 : index
    %c0_4 = arith.constant 0 : index
    %3 = vector.load %arg3[%c0_3, %c0_4] : memref<1x128xf32, #tpu.memory_space<vmem>>, vector<1x128xf32>
    %4 = vector.broadcast %3 : vector<1x128xf32> to vector<16x128xf32>
    %5 = arith.addf %2, %4 : vector<16x128xf32>
    %6 = arith.mulf %5, %5 : vector<16x128xf32>
    %7 = arith.mulf %5, %6 : vector<16x128xf32>
    %cst_5 = arith.constant 4.471500e-02 : f32
    %8 = vector.broadcast %cst_5 : f32 to vector<16x128xf32>
    %9 = arith.mulf %8, %7 : vector<16x128xf32>
    %10 = arith.addf %5, %9 : vector<16x128xf32>
    %cst_6 = arith.constant 0.797884583 : f32
    %11 = vector.broadcast %cst_6 : f32 to vector<16x128xf32>
    %12 = arith.mulf %11, %10 : vector<16x128xf32>
    %13 = math.tanh %12 : vector<16x128xf32>
    %cst_7 = arith.constant 1.000000e+00 : f32
    %14 = vector.broadcast %cst_7 : f32 to vector<16x128xf32>
    %15 = arith.addf %14, %13 : vector<16x128xf32>
    %cst_8 = arith.constant 5.000000e-01 : f32
    %16 = vector.broadcast %cst_8 : f32 to vector<16x128xf32>
    %17 = arith.mulf %16, %15 : vector<16x128xf32>
    %18 = arith.mulf %5, %17 : vector<16x128xf32>
    %c0_9 = arith.constant 0 : index
    %c0_10 = arith.constant 0 : index
    %19 = vector.load %arg4[%c0_9, %c0_10] : memref<128x128xf32, #tpu.memory_space<vmem>>, vector<128x128xf32>
    %cst_11 = arith.constant dense<0.000000e+00> : vector<16x128xf32>
    %20 = tpu.matmul %18, %19, %cst_11 {dimension_numbers = #tpu.dot_dimension_numbers<[1], [0], [0], [1], [0, 0, 1, 1], [], []>} : vector<16x128xf32>, vector<128x128xf32>, vector<16x128xf32> -> vector<16x128xf32>
    %c0_12 = arith.constant 0 : index
    %c0_13 = arith.constant 0 : index
    %21 = vector.load %arg5[%c0_12, %c0_13] : memref<1x128xf32, #tpu.memory_space<vmem>>, vector<1x128xf32>
    %22 = vector.broadcast %21 : vector<1x128xf32> to vector<16x128xf32>
    %23 = arith.addf %20, %22 : vector<16x128xf32>
    %c0_14 = arith.constant 0 : index
    %c0_15 = arith.constant 0 : index
    %24 = vector.load %arg6[%c0_14, %c0_15] : memref<16x128xf32, #tpu.memory_space<vmem>>, vector<16x128xf32>
    tpu.vector_store %arg6[%c0_14, %c0_15], %23 {strides = array<i32>} : memref<16x128xf32, #tpu.memory_space<vmem>>, vector<16x128xf32>,
    return
  }
  func.func @transform_0(%arg0: i32) -> (i32, i32) {
    %c0_i32 = arith.constant 0 : i32
    %c0_i32_0 = arith.constant 0 : i32
    return %arg0, %c0_i32 : i32, i32
  }
  func.func @transform_1(%arg0: i32) -> (i32, i32) {
    %c0_i32 = arith.constant 0 : i32
    %c0_i32_0 = arith.constant 0 : i32
    %c0_i32_1 = arith.constant 0 : i32
    return %c0_i32, %c0_i32_0 : i32, i32
  }
  func.func @transform_2(%arg0: i32) -> (i32, i32) {
    %c0_i32 = arith.constant 0 : i32
    %c0_i32_0 = arith.constant 0 : i32
    %c0_i32_1 = arith.constant 0 : i32
    return %c0_i32, %c0_i32_0 : i32, i32
  }
  func.func @transform_3(%arg0: i32) -> (i32, i32) {
    %c0_i32 = arith.constant 0 : i32
    %c0_i32_0 = arith.constant 0 : i32
    %c0_i32_1 = arith.constant 0 : i32
    return %c0_i32, %c0_i32_0 : i32, i32
  }
  func.func @transform_4(%arg0: i32) -> (i32, i32) {
    %c0_i32 = arith.constant 0 : i32
    %c0_i32_0 = arith.constant 0 : i32
    %c0_i32_1 = arith.constant 0 : i32
    return %c0_i32, %c0_i32_0 : i32, i32
  }
  func.func @transform_5(%arg0: i32) -> (i32, i32) {
    %c0_i32 = arith.constant 0 : i32
    %c0_i32_0 = arith.constant 0 : i32
    return %arg0, %c0_i32 : i32, i32
  }
}

</mosaic_0001>

<llo_original>
// kernel: mlp_pallas.1
$region0: #{mlp_pallas.1}
  #allocation0 [shape = 'u32[]', space=smem, size = 0x4, offset = 0x4, fixed_abs, tag = 'smem constant byte address 0x4 - core index']
  #allocation1 [shape = 'u32[72,128]{1,0:T(1,128)}', space=vmem, size = 0x9000, scoped, tag = 'internal scratch']
  #allocation2 [shape = 'f32[16,128]{1,0:T(8,128)}', space=vmem, size = 0x2000, scoped, tag = 'scratch operand']
  %s0 = inlined_call_operand.vmem [shape: f32[16,128], index: 0, kind: input, shape index: {}]
  %s1 = inlined_call_operand.hbm [shape: f32[128,128], index: 1, kind: input, shape index: {}]
  %s2 = inlined_call_operand.vmem [shape: f32[1,128], index: 2, kind: input, shape index: {}]
  %s3 = inlined_call_operand.hbm [shape: f32[128,128], index: 3, kind: input, shape index: {}]
  %s4 = inlined_call_operand.vmem [shape: f32[1,128], index: 4, kind: input, shape index: {}]
  %s5 = inlined_call_operand.vmem [shape: f32[16,128], index: 5, kind: output, shape index: {}]
  %s6 = sld [smem:[#allocation0]]
  $region38: #{mlp_pallas.1} parent=0
    _
  %s8 = ssub.s32 1, %s6
  %s9 = scalar_select 0, %s8, %s6
  $region1: #{mlp_pallas.1} parent=0
    #allocation3 [shape = 'u8[65536]{0}', space=vmem, size = 0x10000, scoped, tag = 'input window, operand 1, single buffered']
    #allocation4 [shape = 's32[1]{0}', space=sflag, size = 0x4, scoped, tag = 'scoped memory for mlp_pallas.1']
    #allocation5 [shape = 'u8[65536]{0}', space=vmem, size = 0x10000, scoped, tag = 'input window, operand 3, single buffered']
    #allocation6 [shape = 's32[1]{0}', space=sflag, size = 0x4, scoped, tag = 'scoped memory for mlp_pallas.1']
    %10 = vsyncpa [#allocation4], 0
    %11 = vsyncpa [#allocation6], 0
    // Predicated region
    $region2: #{mlp_pallas.1} parent=1 // pred_check
      _
    $region3: #{mlp_pallas.1} parent=1 // pred_check_branch
      %13 = sbr.rel (0) target = $region5
    $region4: #{mlp_pallas.1} parent=1 // pred_region
      _
    $region5: #{mlp_pallas.1} parent=1 // pred_fallthru
      _
    // Predicated region
    $region6: #{mlp_pallas.1} parent=1 // pred_check
      _
    $region7: #{mlp_pallas.1} parent=1 // pred_check_branch
      %15 = sbr.rel (0) target = $region9
    $region8: #{mlp_pallas.1} parent=1 // pred_region
      %17 = vsyncadd [#allocation4], 0
      %s18 = sshll.u32 %s1, 4
      %s19 = int_to_ptr.hbm [resolvable:$true] %s18
      %s20 = sshll.u32 [#allocation3], 4
      %s21 = int_to_ptr.vmem [resolvable:$true] %s20
      %26 = dma.hbm_to_vmem [thread:$0]  %s19, 2048, %s21, [#allocation4], 128, 128, 8
    $region9: #{mlp_pallas.1} parent=1 // pred_fallthru
      _
    // Predicated region
    $region10: #{mlp_pallas.1} parent=1 // pred_check
      _
    $region11: #{mlp_pallas.1} parent=1 // pred_check_branch
      %28 = sbr.rel (0) target = $region13
    $region12: #{mlp_pallas.1} parent=1 // pred_region
      _
    $region13: #{mlp_pallas.1} parent=1 // pred_fallthru
      _
    // Predicated region
    $region14: #{mlp_pallas.1} parent=1 // pred_check
      _
    $region15: #{mlp_pallas.1} parent=1 // pred_check_branch
      %30 = sbr.rel (0) target = $region17
    $region16: #{mlp_pallas.1} parent=1 // pred_region
      %32 = vsyncadd [#allocation6], 0
      %s33 = sshll.u32 %s3, 4
      %s34 = int_to_ptr.hbm [resolvable:$true] %s33
      %s35 = sshll.u32 [#allocation5], 4
      %s36 = int_to_ptr.vmem [resolvable:$true] %s35
      %41 = dma.hbm_to_vmem [thread:$0]  %s34, 2048, %s36, [#allocation6], 128, 128, 8
    $region17: #{mlp_pallas.1} parent=1 // pred_fallthru
      _
    // Predicated region
    $region18: #{mlp_pallas.1} parent=1 // pred_check
      _
    $region19: #{mlp_pallas.1} parent=1 // pred_check_branch
      %43 = sbr.rel (0) target = $region21
    $region20: #{mlp_pallas.1} parent=1 // pred_region
      _
    $region21: #{mlp_pallas.1} parent=1 // pred_fallthru
      _
    // Predicated region
    $region22: #{mlp_pallas.1} parent=1 // pred_check
      _
    $region23: #{mlp_pallas.1} parent=1 // pred_check_branch
      %45 = sbr.rel (0) target = $region25
    $region24: #{mlp_pallas.1} parent=1 // pred_region
      %47 = dma.done [#allocation4], 2048
    $region25: #{mlp_pallas.1} parent=1 // pred_fallthru
      _
    // Predicated region
    $region26: #{mlp_pallas.1} parent=1 // pred_check
      _
    $region27: #{mlp_pallas.1} parent=1 // pred_check_branch
      %49 = sbr.rel (0) target = $region29
    $region28: #{mlp_pallas.1} parent=1 // pred_region
      %51 = dma.done [#allocation6], 2048
    $region29: #{mlp_pallas.1} parent=1 // pred_fallthru
      _
    %v52 = vld [vmem:[%s0] sm:$0xff]
    %v53 = vld [vmem:[%s0 + $0x8] sm:$0xff]
    %v54 = vld [vmem:[#allocation3] sm:$0xff]
    %v55 = vld [vmem:[#allocation3 + $0x8] sm:$0xff]
    %v56 = vld [vmem:[#allocation3 + $0x10] sm:$0xff]
    %v57 = vld [vmem:[#allocation3 + $0x18] sm:$0xff]
    %v58 = vld [vmem:[#allocation3 + $0x20] sm:$0xff]
    %v59 = vld [vmem:[#allocation3 + $0x28] sm:$0xff]
    %v60 = vld [vmem:[#allocation3 + $0x30] sm:$0xff]
    %v61 = vld [vmem:[#allocation3 + $0x38] sm:$0xff]
    %v62 = vld [vmem:[#allocation3 + $0x40] sm:$0xff]
    %v63 = vld [vmem:[#allocation3 + $0x48] sm:$0xff]
    %v64 = vld [vmem:[#allocation3 + $0x50] sm:$0xff]
    %v65 = vld [vmem:[#allocation3 + $0x58] sm:$0xff]
    %v66 = vld [vmem:[#allocation3 + $0x60] sm:$0xff]
    %v67 = vld [vmem:[#allocation3 + $0x68] sm:$0xff]
    %v68 = vld [vmem:[#allocation3 + $0x70] sm:$0xff]
    %v69 = vld [vmem:[#allocation3 + $0x78] sm:$0xff]
    %v70 = vld [vmem:[%s2] sm:$0x1]
    %v72 = vperm.slane %v70, 0
    %74 = vmatpush.msra.mxu0 %v69
    %75 = vmatpush.msra.mxu0 %v68
    %76 = vmatpush.msra.mxu0 %v67
    %77 = vmatpush.msra.mxu0 %v66
    %78 = vmatpush.msra.mxu0 %v65
    %79 = vmatpush.msra.mxu0 %v64
    %80 = vmatpush.msra.mxu0 %v63
    %81 = vmatpush.msra.mxu0 %v62
    %82 = vmatpush.msra.mxu0 %v61
    %83 = vmatpush.msra.mxu0 %v60
    %84 = vmatpush.msra.mxu0 %v59
    %85 = vmatpush.msra.mxu0 %v58
    %86 = vmatpush.msra.mxu0 %v57
    %87 = vmatpush.msra.mxu0 %v56
    %88 = vmatpush.msra.mxu0 %v55
    %89 = vmatpush.msra.mxu0 %v54
    %90 = vmatmul.f32.gmra.mxu0 %v52
    %v91 = vpop.f32.mrf.mxu0
    %v92 = vadd.f32 %v72, %v91
    %93 = vmatmul.f32.gmra.mxu0 %v53
    %v94 = vpop.f32.mrf.mxu0
    %v95 = vadd.f32 %v72, %v94
    %96 = vdwg.mxu0
    %v97 = vmul.f32 %v92, %v92
    %v98 = vmul.f32 %v95, %v95
    %v99 = vmul.f32 %v92, %v97
    %v100 = vmul.f32 %v95, %v98
    %v101 = vmul.f32 %v99, 0.044715
    %v102 = vmul.f32 %v100, 0.044715
    %v103 = vadd.f32 %v92, %v101
    %v104 = vadd.f32 %v95, %v102
    %v105 = vmul.f32 %v103, 0.7978846
    %v106 = vmul.f32 %v104, 0.7978846
    %v107 = vtanh.pop %v105
    %v108 = vtanh.pop %v106
    %v109 = vadd.f32 %v107, 1.0
    %v110 = vadd.f32 %v108, 1.0
    %v111 = vmul.f32 %v109, 0.5
    %v112 = vmul.f32 %v110, 0.5
    %v113 = vmul.f32 %v92, %v111
    %v114 = vmul.f32 %v95, %v112
    %v115 = vld [vmem:[#allocation5] sm:$0xff]
    %v116 = vld [vmem:[#allocation5 + $0x8] sm:$0xff]
    %v117 = vld [vmem:[#allocation5 + $0x10] sm:$0xff]
    %v118 = vld [vmem:[#allocation5 + $0x18] sm:$0xff]
    %v119 = vld [vmem:[#allocation5 + $0x20] sm:$0xff]
    %v120 = vld [vmem:[#allocation5 + $0x28] sm:$0xff]
    %v121 = vld [vmem:[#allocation5 + $0x30] sm:$0xff]
    %v122 = vld [vmem:[#allocation5 + $0x38] sm:$0xff]
    %v123 = vld [vmem:[#allocation5 + $0x40] sm:$0xff]
    %v124 = vld [vmem:[#allocation5 + $0x48] sm:$0xff]
    %v125 = vld [vmem:[#allocation5 + $0x50] sm:$0xff]
    %v126 = vld [vmem:[#allocation5 + $0x58] sm:$0xff]
    %v127 = vld [vmem:[#allocation5 + $0x60] sm:$0xff]
    %v128 = vld [vmem:[#allocation5 + $0x68] sm:$0xff]
    %v129 = vld [vmem:[#allocation5 + $0x70] sm:$0xff]
    %v130 = vld [vmem:[#allocation5 + $0x78] sm:$0xff]
    %v131 = vld [vmem:[%s4] sm:$0x1]
    %v133 = vperm.slane %v131, 0
    %135 = vmatpush.msra.mxu0 %v130
    %136 = vmatpush.msra.mxu0 %v129
    %137 = vmatpush.msra.mxu0 %v128
    %138 = vmatpush.msra.mxu0 %v127
    %139 = vmatpush.msra.mxu0 %v126
    %140 = vmatpush.msra.mxu0 %v125
    %141 = vmatpush.msra.mxu0 %v124
    %142 = vmatpush.msra.mxu0 %v123
    %143 = vmatpush.msra.mxu0 %v122
    %144 = vmatpush.msra.mxu0 %v121
    %145 = vmatpush.msra.mxu0 %v120
    %146 = vmatpush.msra.mxu0 %v119
    %147 = vmatpush.msra.mxu0 %v118
    %148 = vmatpush.msra.mxu0 %v117
    %149 = vmatpush.msra.mxu0 %v116
    %150 = vmatpush.msra.mxu0 %v115
    %151 = vmatmul.f32.gmra.mxu0 %v113
    %v152 = vpop.f32.mrf.mxu0
    %v153 = vadd.f32 %v133, %v152
    %154 = vmatmul.f32.gmra.mxu0 %v114
    %v155 = vpop.f32.mrf.mxu0
    %v156 = vadd.f32 %v133, %v155
    %157 = vdwg.mxu0
    %158 = vst [vmem:[%s5] sm:$0xff] %v153
    %159 = vst [vmem:[%s5 + $0x8] sm:$0xff] %v156
    // Predicated region
    $region30: #{mlp_pallas.1} parent=1 // pred_check
      _
    $region31: #{mlp_pallas.1} parent=1 // pred_check_branch
      %161 = sbr.rel (0) target = $region33
    $region32: #{mlp_pallas.1} parent=1 // pred_region
      _
    $region33: #{mlp_pallas.1} parent=1 // pred_fallthru
      _
    // Predicated region
    $region34: #{mlp_pallas.1} parent=1 // pred_check
      _
    $region35: #{mlp_pallas.1} parent=1 // pred_check_branch
      %163 = sbr.rel (0) target = $region37
    $region36: #{mlp_pallas.1} parent=1 // pred_region
      _
    $region37: #{mlp_pallas.1} parent=1 // pred_fallthru
      _
    %164 = vsyncpa [#allocation4], 1
    %165 = vsyncpa [#allocation6], 1

</llo_original>
